<compile_context>
chip_gen: v7x
topology: tpu7x:2x2x1
jax: 0.10.0
libtpu: 0.0.40
codegen_flags: <defaults>
</compile_context>

<pallas_src>
import functools

import jax
import jax.numpy as jnp
from jax import lax
from jax.experimental import pallas as pl
from jax.experimental.pallas import tpu as pltpu


def _round_up(a, m):
    return (a + m - 1) // m * m


def _cdiv(a, b):
    return -(-a // b)


def _causal_conv_bn_relu_kernel(x_ref, tail_ref, w_ref, shift_ref, o_ref, xbuf_ref,
                                *, kernel_size, dilation, pad, pad_align, tile_l):
    """Grid = (batch, time_tiles); both axes are parallel (no cross-tile carry).

    x_ref     : (1, tile_l, c_in_pad)            bf16  current time tile
    tail_ref  : (1, pad_align, c_in_pad)         bf16  causal halo (last `pad` rows valid)
    w_ref     : (K, c_in_pad, c_out_pad)         bf16  conv weights, BN scale folded in
    shift_ref : (1, c_out_pad)                   f32   folded BN shift (includes conv bias)
    o_ref     : (1, tile_l, c_out_pad)           bf16
    xbuf_ref  : (pad_align + tile_l, c_in_pad)   bf16  [halo | current tile], aligned
    """
    if pad > 0:
        # Both stores are 16-row aligned (pad_align, tile_l multiples of 16) -> no relayout.
        xbuf_ref[0:pad_align, :] = tail_ref[0]
        xbuf_ref[pad_align:, :] = x_ref[0]

    # Tap K-1 has offset exactly `pad` -> identical to the raw tile; read it directly
    # (aligned, skips the staging buffer for the largest tap).
    acc = jnp.dot(x_ref[0], w_ref[kernel_size - 1],
                  preferred_element_type=jnp.float32)

    # Remaining taps: static, possibly sublane-misaligned slices of the halo'd buffer;
    # K accumulated bf16 x bf16 -> f32 MXU dots (contraction = c_in_pad).
    for k in range(kernel_size - 1):
        off = pad_align - pad + k * dilation
        acc = acc + jnp.dot(xbuf_ref[off:off + tile_l, :], w_ref[k],
                            preferred_element_type=jnp.float32)

    # Folded BatchNorm(eval) shift + ReLU (Dropout = identity in eval); bf16 writeback.
    o_ref[0] = jnp.maximum(acc + shift_ref[0], 0.0).astype(o_ref.dtype)


def _pick_tile(length, c_in_pad, c_out_pad, k, pad_align):
    """Time-tile sizing: (a) fits VMEM with headroom on every generation (v7x has
    64 MiB), (b) cdiv-based so the padded length overshoots by < 16 rows, (c) a
    multiple of 16 (bf16 sublane packing -> unmasked loads/stores)."""
    try:
        vmem_bytes = pltpu.get_tpu_info().vmem_capacity_bytes   # 128 MiB v5e/v6e, 64 MiB v7x
    except Exception:
        vmem_bytes = 64 * 1024 * 1024                            # conservative fallback
    budget = vmem_bytes // 8                                     # generous headroom
    per_row = (2 * c_in_pad * 2        # x tile, bf16, double-buffered
               + 2 * c_out_pad * 2     # out tile, bf16, double-buffered
               + c_in_pad * 2          # staging scratch (bf16)
               + c_out_pad * 4)        # f32 accumulator value
    fixed = (2 * k * c_in_pad * c_out_pad * 2   # folded weights, double-buffered
             + 3 * pad_align * c_in_pad * 2)    # halo input + scratch head
    cap = max(16, (budget - fixed) // per_row)
    cap = min(512, cap)                          # ~512 rows already saturates the pipeline
    cap = max(16, (cap // 16) * 16)
    n_t = _cdiv(length, cap)
    tile_l = _round_up(_cdiv(length, n_t), 16)
    return tile_l, n_t


def causal_conv1d_forward(x_ncl, weight, bias, gamma, beta,
                          running_mean, running_var,
                          *, dilation, eps=1e-5):
    """x_ncl: [N, C_in, L] (PyTorch NCL).  Returns [N, C_out, L] float32."""
    n, c_in, length = x_ncl.shape
    c_out, c_in_w, k = weight.shape
    assert c_in_w == c_in
    pad = (k - 1) * dilation

    lane, sub = 128, 16                               # 128 lanes, bf16 sublane packing
    c_in_pad = _round_up(c_in, lane)
    c_out_pad = _round_up(c_out, lane)
    pad_align = max(sub, _round_up(pad, sub))

    tile_l, n_t = _pick_tile(length, c_in_pad, c_out_pad, k, pad_align)
    len_pad = n_t * tile_l

    # ---- activations: NCL -> NLC bf16, channel + trailing-time padding -----------
    x_nlc = jnp.transpose(x_ncl, (0, 2, 1)).astype(jnp.bfloat16)
    x_nlc = jnp.pad(x_nlc, ((0, 0), (0, len_pad - length), (0, c_in_pad - c_in)))

    # ---- per-tile causal halos: rows [j*tile_l - pad, j*tile_l), zeros before t=0 --
    # Tiny gather (pad rows per tile); lets both grid axes be parallel (v7x 2 TCs).
    if pad > 0:
        ridx = jnp.arange(n_t)[:, None] * tile_l + jnp.arange(pad)[None, :] - pad
        halo = jnp.where((ridx >= 0)[None, :, :, None],
                         x_nlc[:, jnp.maximum(ridx, 0), :],
                         0).astype(jnp.bfloat16)                     # (N, n_t, pad, C)
    else:
        halo = jnp.zeros((n, n_t, 0, c_in_pad), jnp.bfloat16)
    halo = jnp.pad(halo, ((0, 0), (0, 0), (pad_align - pad, 0), (0, 0)))
    halo = halo.reshape(n, n_t * pad_align, c_in_pad)

    # ---- fold BN(eval) scale into the conv weights; shift carries bias/mean/beta ---
    bn_scale = gamma / jnp.sqrt(running_var + eps)                   # (C_out,)
    w_fold = weight * bn_scale[:, None, None]                        # (C_out, C_in, K)
    w_kio = jnp.transpose(w_fold, (2, 1, 0))                         # (K, C_in, C_out)
    w_kio = jnp.pad(w_kio, ((0, 0), (0, c_in_pad - c_in), (0, c_out_pad - c_out)))
    w_kio = w_kio.astype(jnp.bfloat16)
    shift = jnp.pad((bias - running_mean) * bn_scale + beta, (0, c_out_pad - c_out))
    shift = shift.reshape(1, c_out_pad).astype(jnp.float32)

    kernel = functools.partial(_causal_conv_bn_relu_kernel,
                               kernel_size=k, dilation=dilation,
                               pad=pad, pad_align=pad_align, tile_l=tile_l)

    out_nlc = pl.pallas_call(
        kernel,
        out_shape=jax.ShapeDtypeStruct((n, len_pad, c_out_pad), jnp.bfloat16),
        grid_spec=pltpu.PrefetchScalarGridSpec(
            num_scalar_prefetch=0,
            grid=(n, n_t),
            in_specs=[
                pl.BlockSpec((1, tile_l, c_in_pad), lambda b, j: (b, j, 0)),
                pl.BlockSpec((1, pad_align, c_in_pad), lambda b, j: (b, j, 0)),
                pl.BlockSpec((k, c_in_pad, c_out_pad), lambda b, j: (0, 0, 0)),
                pl.BlockSpec((1, c_out_pad), lambda b, j: (0, 0)),
            ],
            out_specs=pl.BlockSpec((1, tile_l, c_out_pad), lambda b, j: (b, j, 0)),
            scratch_shapes=[
                pltpu.VMEM((pad_align + tile_l, c_in_pad), jnp.bfloat16),  # aligned halo+tile
            ],
        ),
        compiler_params=pltpu.CompilerParams(
            dimension_semantics=("parallel", "parallel"),
            vmem_limit_bytes=32 * 1024 * 1024,   # safe on v5e/v6e/v7x; usage is a few MiB
        ),
    )(x_nlc, halo, w_kio, shift)

    out = out_nlc[:, :length, :c_out]
    # Module contract is NCL float32; multi-layer TCNs should instead keep this NLC bf16.
    return jnp.transpose(out, (0, 2, 1)).astype(jnp.float32)


def _reference(x_ncl, weight, bias, gamma, beta, running_mean, running_var,
               *, dilation, eps=1e-5):
    """Pure-JAX reference matching the PyTorch eval-mode forward."""
    k = weight.shape[-1]
    pad = (k - 1) * dilation
    y = lax.conv_general_dilated(
        x_ncl, weight,
        window_strides=(1,),
        padding=[(pad, pad)],
        rhs_dilation=(dilation,),
        dimension_numbers=("NCH", "OIH", "NCH"),
        precision=lax.Precision.HIGHEST,
    ) + bias[None, :, None]
    if pad > 0:
        y = y[:, :, :-pad]                                               # TrailingPadding
    y = (y - running_mean[None, :, None]) / jnp.sqrt(running_var[None, :, None] + eps)
    y = y * gamma[None, :, None] + beta[None, :, None]                   # BatchNorm1d (eval)
    return jnp.maximum(y, 0.0)                                           # ReLU (dropout = id)


if __name__ == "__main__":
    # small shapes consistent with the module
    N, C_IN, C_OUT, K, DIL, L = 2, 4, 8, 3, 2, 16

    key = jax.random.PRNGKey(0)
    k1, k2, k3, k4, k5, k6, k7 = jax.random.split(key, 7)

    x = jax.random.normal(k1, (N, C_IN, L), dtype=jnp.float32)
    weight = 0.3 * jax.random.normal(k2, (C_OUT, C_IN, K), dtype=jnp.float32)
    bias = 0.1 * jax.random.normal(k3, (C_OUT,), dtype=jnp.float32)
    gamma = 1.0 + 0.1 * jax.random.normal(k4, (C_OUT,), dtype=jnp.float32)
    beta = 0.1 * jax.random.normal(k5, (C_OUT,), dtype=jnp.float32)
    running_mean = 0.05 * jax.random.normal(k6, (C_OUT,), dtype=jnp.float32)
    running_var = 1.0 + 0.1 * jnp.abs(jax.random.normal(k7, (C_OUT,), dtype=jnp.float32))

    out = causal_conv1d_forward(x, weight, bias, gamma, beta,
                                running_mean, running_var, dilation=DIL)
    out = jax.block_until_ready(out)

    # Reference on bf16-rounded inputs (kernel feeds the MXU in bf16 with BN scale folded
    # into the weights, accumulates f32, and writes bf16 output) -> loose-ish tolerance.
    x_q = x.astype(jnp.bfloat16).astype(jnp.float32)
    w_q = weight.astype(jnp.bfloat16).astype(jnp.float32)
    ref = _reference(x_q, w_q, bias, gamma, beta, running_mean, running_var,
                     dilation=DIL)

    assert out.shape == (N, C_OUT, L)
    assert jnp.allclose(out, ref, atol=3e-2, rtol=3e-2), "mismatch vs reference"

    print("KERNEL_OK")
</pallas_src>

<mosaic_0001>
module attributes {stable_mosaic.version = 11 : i64} {
  func.func @_causal_conv_bn_relu_kernel(%arg0: i32, %arg1: i32, %arg2: memref<1x16x128xbf16, #tpu.memory_space<vmem>>, %arg3: memref<1x16x128xbf16, #tpu.memory_space<vmem>>, %arg4: memref<3x128x128xbf16, #tpu.memory_space<vmem>>, %arg5: memref<1x128xf32, #tpu.memory_space<vmem>>, %arg6: memref<1x16x128xbf16, #tpu.memory_space<vmem>>, %arg7: memref<32x128xbf16, #tpu.memory_space<vmem>>) attributes {dimension_semantics = [#tpu.dimension_semantics<parallel>, #tpu.dimension_semantics<parallel>], iteration_bounds = array<i64: 2, 1>, scalar_prefetch = 0 : i64, scratch_operands = 1 : i64, tpu.core_type = #tpu.core_type<tc>, window_params = [{transform_indices = @transform_0, window_bounds = array<i64: 1, 16, 128>}, {transform_indices = @transform_1, window_bounds = array<i64: 1, 16, 128>}, {pipeline_mode = #tpu.pipeline_mode<synchronous>, transform_indices = @transform_2, window_bounds = array<i64: 3, 128, 128>}, {pipeline_mode = #tpu.pipeline_mode<synchronous>, transform_indices = @transform_3, window_bounds = array<i64: 1, 128>}, {transform_indices = @transform_4, window_bounds = array<i64: 1, 16, 128>}]} {
    %c0 = arith.constant 0 : index
    %c0_0 = arith.constant 0 : index
    %c0_1 = arith.constant 0 : index
    %0 = vector.load %arg3[%c0, %c0_0, %c0_1] : memref<1x16x128xbf16, #tpu.memory_space<vmem>>, vector<1x16x128xbf16>
    %1 = vector.shape_cast %0 : vector<1x16x128xbf16> to vector<16x128xbf16>
    %c0_2 = arith.constant 0 : index
    %c0_3 = arith.constant 0 : index
    %2 = vector.load %arg7[%c0_2, %c0_3] : memref<32x128xbf16, #tpu.memory_space<vmem>>, vector<16x128xbf16>
    tpu.vector_store %arg7[%c0_2, %c0_3], %1 {strides = array<i32>} : memref<32x128xbf16, #tpu.memory_space<vmem>>, vector<16x128xbf16>,
    %c0_4 = arith.constant 0 : index
    %c0_5 = arith.constant 0 : index
    %c0_6 = arith.constant 0 : index
    %3 = vector.load %arg2[%c0_4, %c0_5, %c0_6] : memref<1x16x128xbf16, #tpu.memory_space<vmem>>, vector<1x16x128xbf16>
    %4 = vector.shape_cast %3 : vector<1x16x128xbf16> to vector<16x128xbf16>
    %c16 = arith.constant 16 : index
    %c0_7 = arith.constant 0 : index
    %5 = vector.load %arg7[%c16, %c0_7] : memref<32x128xbf16, #tpu.memory_space<vmem>>, vector<16x128xbf16>
    tpu.vector_store %arg7[%c16, %c0_7], %4 {strides = array<i32>} : memref<32x128xbf16, #tpu.memory_space<vmem>>, vector<16x128xbf16>,
    %c0_8 = arith.constant 0 : index
    %c0_9 = arith.constant 0 : index
    %c0_10 = arith.constant 0 : index
    %6 = vector.load %arg2[%c0_8, %c0_9, %c0_10] : memref<1x16x128xbf16, #tpu.memory_space<vmem>>, vector<1x16x128xbf16>
    %7 = vector.shape_cast %6 : vector<1x16x128xbf16> to vector<16x128xbf16>
    %c2 = arith.constant 2 : index
    %c0_11 = arith.constant 0 : index
    %c0_12 = arith.constant 0 : index
    %8 = vector.load %arg4[%c2, %c0_11, %c0_12] : memref<3x128x128xbf16, #tpu.memory_space<vmem>>, vector<1x128x128xbf16>
    %9 = vector.shape_cast %8 : vector<1x128x128xbf16> to vector<128x128xbf16>
    %cst = arith.constant dense<0.000000e+00> : vector<16x128xf32>
    %10 = tpu.matmul %7, %9, %cst {dimension_numbers = #tpu.dot_dimension_numbers<[1], [0], [0], [1], [0, 0, 1, 1], [], []>} : vector<16x128xbf16>, vector<128x128xbf16>, vector<16x128xf32> -> vector<16x128xf32>
    %c12 = arith.constant 12 : index
    %c0_13 = arith.constant 0 : index
    %11 = vector.load %arg7[%c12, %c0_13] : memref<32x128xbf16, #tpu.memory_space<vmem>>, vector<16x128xbf16>
    %c0_14 = arith.constant 0 : index
    %c0_15 = arith.constant 0 : index
    %c0_16 = arith.constant 0 : index
    %12 = vector.load %arg4[%c0_14, %c0_15, %c0_16] : memref<3x128x128xbf16, #tpu.memory_space<vmem>>, vector<1x128x128xbf16>
    %13 = vector.shape_cast %12 : vector<1x128x128xbf16> to vector<128x128xbf16>
    %cst_17 = arith.constant dense<0.000000e+00> : vector<16x128xf32>
    %14 = tpu.matmul %11, %13, %cst_17 {dimension_numbers = #tpu.dot_dimension_numbers<[1], [0], [0], [1], [0, 0, 1, 1], [], []>} : vector<16x128xbf16>, vector<128x128xbf16>, vector<16x128xf32> -> vector<16x128xf32>
    %15 = arith.addf %10, %14 : vector<16x128xf32>
    %c14 = arith.constant 14 : index
    %c0_18 = arith.constant 0 : index
    %16 = vector.load %arg7[%c14, %c0_18] : memref<32x128xbf16, #tpu.memory_space<vmem>>, vector<16x128xbf16>
    %c1 = arith.constant 1 : index
    %c0_19 = arith.constant 0 : index
    %c0_20 = arith.constant 0 : index
    %17 = vector.load %arg4[%c1, %c0_19, %c0_20] : memref<3x128x128xbf16, #tpu.memory_space<vmem>>, vector<1x128x128xbf16>
    %18 = vector.shape_cast %17 : vector<1x128x128xbf16> to vector<128x128xbf16>
    %cst_21 = arith.constant dense<0.000000e+00> : vector<16x128xf32>
    %19 = tpu.matmul %16, %18, %cst_21 {dimension_numbers = #tpu.dot_dimension_numbers<[1], [0], [0], [1], [0, 0, 1, 1], [], []>} : vector<16x128xbf16>, vector<128x128xbf16>, vector<16x128xf32> -> vector<16x128xf32>
    %20 = arith.addf %15, %19 : vector<16x128xf32>
    %c0_22 = arith.constant 0 : index
    %c0_23 = arith.constant 0 : index
    %21 = vector.load %arg5[%c0_22, %c0_23] : memref<1x128xf32, #tpu.memory_space<vmem>>, vector<1x128xf32>
    %22 = vector.shape_cast %21 : vector<1x128xf32> to vector<128xf32>
    %23 = vector.shape_cast %22 : vector<128xf32> to vector<1x128xf32>
    %24 = vector.broadcast %23 : vector<1x128xf32> to vector<16x128xf32>
    %25 = arith.addf %20, %24 : vector<16x128xf32>
    %cst_24 = arith.constant 0.000000e+00 : f32
    %26 = vector.broadcast %cst_24 : f32 to vector<16x128xf32>
    %27 = arith.maximumf %25, %26 : vector<16x128xf32>
    %28 = arith.truncf %27 : vector<16x128xf32> to vector<16x128xbf16>
    %c0_25 = arith.constant 0 : index
    %c0_26 = arith.constant 0 : index
    %c0_27 = arith.constant 0 : index
    %29 = vector.load %arg6[%c0_25, %c0_26, %c0_27] : memref<1x16x128xbf16, #tpu.memory_space<vmem>>, vector<1x16x128xbf16>
    %30 = vector.shape_cast %29 : vector<1x16x128xbf16> to vector<16x128xbf16>
    %31 = vector.shape_cast %28 : vector<16x128xbf16> to vector<1x16x128xbf16>
    tpu.vector_store %arg6[%c0_25, %c0_26, %c0_27], %31 {strides = array<i32>} : memref<1x16x128xbf16, #tpu.memory_space<vmem>>, vector<1x16x128xbf16>,
    return
  }
  func.func @transform_0(%arg0: i32, %arg1: i32) -> (i32, i32, i32) {
    %c0_i32 = arith.constant 0 : i32
    %c0_i32_0 = arith.constant 0 : i32
    return %arg0, %arg1, %c0_i32 : i32, i32, i32
  }
  func.func @transform_1(%arg0: i32, %arg1: i32) -> (i32, i32, i32) {
    %c0_i32 = arith.constant 0 : i32
    %c0_i32_0 = arith.constant 0 : i32
    return %arg0, %arg1, %c0_i32 : i32, i32, i32
  }
  func.func @transform_2(%arg0: i32, %arg1: i32) -> (i32, i32, i32) {
    %c0_i32 = arith.constant 0 : i32
    %c0_i32_0 = arith.constant 0 : i32
    %c0_i32_1 = arith.constant 0 : i32
    %c0_i32_2 = arith.constant 0 : i32
    return %c0_i32, %c0_i32_0, %c0_i32_1 : i32, i32, i32
  }
  func.func @transform_3(%arg0: i32, %arg1: i32) -> (i32, i32) {
    %c0_i32 = arith.constant 0 : i32
    %c0_i32_0 = arith.constant 0 : i32
    %c0_i32_1 = arith.constant 0 : i32
    return %c0_i32, %c0_i32_0 : i32, i32
  }
  func.func @transform_4(%arg0: i32, %arg1: i32) -> (i32, i32, i32) {
    %c0_i32 = arith.constant 0 : i32
    %c0_i32_0 = arith.constant 0 : i32
    return %arg0, %arg1, %c0_i32 : i32, i32, i32
  }
}

</mosaic_0001>

<llo_original>
// kernel: tpu_custom_call.1
$region0: #{tpu_custom_call.1}
  #allocation0 [shape = 'u32[]', space=smem, size = 0x4, offset = 0x4, fixed_abs, tag = 'smem constant byte address 0x4 - core index']
  #allocation1 [shape = 'u32[144,128]{1,0:T(1,128)}', space=vmem, size = 0x12000, scoped, tag = 'internal scratch']
  #allocation2 [shape = 'bf16[32,128]{1,0:T(16,128)(2,1)}', space=vmem, size = 0x2000, scoped, tag = 'scratch operand']
  %s0 = inlined_call_operand.hbm [shape: bf16[2,16,128], index: 0, kind: input, shape index: {}]
  %s1 = inlined_call_operand.hbm [shape: bf16[2,16,128], index: 1, kind: input, shape index: {}]
  %s2 = inlined_call_operand.hbm [shape: bf16[3,128,128], index: 2, kind: input, shape index: {}]
  %s3 = inlined_call_operand.vmem [shape: f32[1,128], index: 3, kind: input, shape index: {}]
  %s4 = inlined_call_operand.hbm [shape: bf16[2,16,128], index: 4, kind: output, shape index: {}]
  %s5 = sld [smem:[#allocation0]]
  $region61: #{tpu_custom_call.1} parent=0
    _
  %s7 = ssub.s32 1, %s5
  %s8 = scalar_select 0, %s7, %s5
  $region1: #{tpu_custom_call.1} parent=0
    #allocation3 [shape = 'u8[8192]{0}', space=vmem, size = 0x2000, scoped, tag = 'input window, operand 0']
    #allocation4 [shape = 's32[2]{0}', space=sflag, size = 0x8, scoped, tag = 'scoped memory for tpu_custom_call.1']
    #allocation5 [shape = 's32[2]{0}', space=sflag, size = 0x8, scoped, tag = 'scoped memory for tpu_custom_call.1']
    #allocation6 [shape = 'u8[8192]{0}', space=vmem, size = 0x2000, scoped, tag = 'input window, operand 1']
    #allocation7 [shape = 's32[2]{0}', space=sflag, size = 0x8, scoped, tag = 'scoped memory for tpu_custom_call.1']
    #allocation8 [shape = 'u8[98304]{0}', space=vmem, size = 0x18000, scoped, tag = 'input window, operand 2, single buffered']
    #allocation9 [shape = 'u8[8192]{0}', space=vmem, size = 0x2000, scoped, tag = 'output window, operand 0']
    %9 = vsyncpa [#allocation4], 0
    %s10 = scalar_lea.sflag [#allocation4], 1
    %11 = vsyncpa %s10, 0
    %12 = vsyncpa [#allocation7], 0
    %s13 = scalar_lea.sflag [#allocation7], 1
    %14 = vsyncpa %s13, 0
    %15 = vsyncpa [#allocation5], 0
    %s16 = scalar_lea.sflag [#allocation5], 1
    %17 = vsyncpa %s16, 0
    loop: start=0, step=1, limit=4
    $region2: #{tpu_custom_call.1} parent=1 // loop_pre_header
      _
    $region3: #{tpu_custom_call.1} parent=1 // loop_header
      %s19 = sphi 0, %s23
      %p20 = scmp.ge.s32.totalorder %s19, 4
      %s26 = sphi 0, %s38
      %s27 = sphi 0, %s34
      %s28 = sphi 0, %s26
      %s29 = sphi 0, %s27
      %s30 = sphi 0, %s28
      %s31 = sphi 0, %s29
      %s43 = sphi 0, %s45
      %s46 = sphi 0, %s43
      %s47 = sphi 0, %s46
      %s63 = sphi 0, %s47
      %s71 = sphi 0, %s73
      %s74 = sphi 0, %s71
      %s75 = sphi 0, %s74
      %s91 = sphi 0, %s75
      %s95 = sphi 0, %s95
      %s97 = sphi 0, %s95
      %s98 = sphi 0, %s97
      %s112 = sphi 0, %s98
      %s116 = sphi 0, %s116
      %s118 = sphi 0, %s116
      %s119 = sphi 0, %s118
      %s133 = sphi 0, %s119
      %s141 = sphi 0, %s143
      %s144 = sphi 0, %s141
      %s145 = sphi 0, %s144
      %s161 = sphi 0, %s145
    $region4: #{tpu_custom_call.1} parent=1 // loop_header_branch
      %22 = sbr.rel (%p20) target = $region8
    $region5: #{tpu_custom_call.1} parent=1 // loop_body
      %s24 = ssub.s32 %s19, 1
      %s25 = ssub.s32 %s19, 2
      %s32 = sadd.s32 1, %s27
      %p33 = scmp.ge.s32.totalorder %s32, 1
      %s34 = scalar_select %p33, 0, %s32
      %s35 = sadd.s32 1, %s26
      %s36 = scalar_select %p33, %s35, %s26
      %p37 = scmp.ge.s32.totalorder %s36, 2
      %s38 = scalar_select %p37, 0, %s36
      %s39 = ssub.s32 %s26, %s38
      %s40 = ssub.s32 %s27, %s34
      %s41 = sor.u32 %s39, %s40
      %p42 = scmp.eq.s32.totalorder %s41, 0
      %s44 = sadd.s32 %s43, 1
      %s45 = scalar_select %p42, %s43, %s44
      %p48 = pneg %p42
      %p49 = scmp.eq.s32.totalorder %s19, 1
      %p50 = por %p48, %p49
      %p51 = scmp.ne.s32.totalorder %s43, %s46
      %p52 = scmp.eq.s32.totalorder %s19, 0
      %p53 = por %p51, %p52
      %p54 = scmp.ne.s32.totalorder %s43, %s46
      %p55 = scmp.eq.s32.totalorder %s24, 1
      %p56 = por %p54, %p55
      %p57 = scmp.ne.s32.totalorder %s46, %s47
      %p58 = scmp.eq.s32.totalorder %s24, 0
      %p59 = por %p57, %p58
      %p60 = scmp.ne.s32.totalorder %s46, %s47
      %p61 = scmp.eq.s32.totalorder %s25, 1
      %p62 = por %p60, %p61
      %p64 = scmp.ne.s32.totalorder %s47, %s63
      %p65 = scmp.eq.s32.totalorder %s25, 0
      %p66 = por %p64, %p65
      %s67 = ssub.s32 %s26, %s38
      %s68 = ssub.s32 %s27, %s34
      %s69 = sor.u32 %s67, %s68
      %p70 = scmp.eq.s32.totalorder %s69, 0
      %s72 = sadd.s32 %s71, 1
      %s73 = scalar_select %p70, %s71, %s72
      %p76 = pneg %p70
      %p77 = scmp.eq.s32.totalorder %s19, 1
      %p78 = por %p76, %p77
      %p79 = scmp.ne.s32.totalorder %s71, %s74
      %p80 = scmp.eq.s32.totalorder %s19, 0
      %p81 = por %p79, %p80
      %p82 = scmp.ne.s32.totalorder %s71, %s74
      %p83 = scmp.eq.s32.totalorder %s24, 1
      %p84 = por %p82, %p83
      %p85 = scmp.ne.s32.totalorder %s74, %s75
      %p86 = scmp.eq.s32.totalorder %s24, 0
      %p87 = por %p85, %p86
      %p88 = scmp.ne.s32.totalorder %s74, %s75
      %p89 = scmp.eq.s32.totalorder %s25, 1
      %p90 = por %p88, %p89
      %p92 = scmp.ne.s32.totalorder %s75, %s91
      %p93 = scmp.eq.s32.totalorder %s25, 0
      %p94 = por %p92, %p93
      %s96 = sadd.s32 %s95, 1
      %p99 = scmp.eq.s32.totalorder %s19, 1
      %p100 = scmp.ne.s32.totalorder %s95, %s97
      %p101 = scmp.eq.s32.totalorder %s19, 0
      %p102 = por %p100, %p101
      %p103 = scmp.ne.s32.totalorder %s95, %s97
      %p104 = scmp.eq.s32.totalorder %s24, 1
      %p105 = por %p103, %p104
      %p106 = scmp.ne.s32.totalorder %s97, %s98
      %p107 = scmp.eq.s32.totalorder %s24, 0
      %p108 = por %p106, %p107
      %p109 = scmp.ne.s32.totalorder %s97, %s98
      %p110 = scmp.eq.s32.totalorder %s25, 1
      %p111 = por %p109, %p110
      %p113 = scmp.ne.s32.totalorder %s98, %s112
      %p114 = scmp.eq.s32.totalorder %s25, 0
      %p115 = por %p113, %p114
      %s117 = sadd.s32 %s116, 1
      %p120 = scmp.eq.s32.totalorder %s19, 1
      %p121 = scmp.ne.s32.totalorder %s116, %s118
      %p122 = scmp.eq.s32.totalorder %s19, 0
      %p123 = por %p121, %p122
      %p124 = scmp.ne.s32.totalorder %s116, %s118
      %p125 = scmp.eq.s32.totalorder %s24, 1
      %p126 = por %p124, %p125
      %p127 = scmp.ne.s32.totalorder %s118, %s119
      %p128 = scmp.eq.s32.totalorder %s24, 0
      %p129 = por %p127, %p128
      %p130 = scmp.ne.s32.totalorder %s118, %s119
      %p131 = scmp.eq.s32.totalorder %s25, 1
      %p132 = por %p130, %p131
      %p134 = scmp.ne.s32.totalorder %s119, %s133
      %p135 = scmp.eq.s32.totalorder %s25, 0
      %p136 = por %p134, %p135
      %s137 = ssub.s32 %s26, %s38
      %s138 = ssub.s32 %s27, %s34
      %s139 = sor.u32 %s137, %s138
      %p140 = scmp.eq.s32.totalorder %s139, 0
      %s142 = sadd.s32 %s141, 1
      %s143 = scalar_select %p140, %s141, %s142
      %p146 = pneg %p140
      %p147 = scmp.eq.s32.totalorder %s19, 1
      %p148 = por %p146, %p147
      %p149 = scmp.ne.s32.totalorder %s141, %s144
      %p150 = scmp.eq.s32.totalorder %s19, 0
      %p151 = por %p149, %p150
      %p152 = scmp.ne.s32.totalorder %s141, %s144
      %p153 = scmp.eq.s32.totalorder %s24, 1
      %p154 = por %p152, %p153
      %p155 = scmp.ne.s32.totalorder %s144, %s145
      %p156 = scmp.eq.s32.totalorder %s24, 0
      %p157 = por %p155, %p156
      %p158 = scmp.ne.s32.totalorder %s144, %s145
      %p159 = scmp.eq.s32.totalorder %s25, 1
      %p160 = por %p158, %p159
      %p162 = scmp.ne.s32.totalorder %s145, %s161
      %p163 = scmp.eq.s32.totalorder %s25, 0
      %p164 = por %p162, %p163
      %p165 = scmp.le.s32.totalorder 1, %s19
      %p166 = scmp.lt.s32.totalorder %s19, 3
      %p167 = pnand %p165, %p166
      %p168 = pneg %p167
      // Predicated region
      $region9: #{tpu_custom_call.1} parent=5 // pred_check
        _
      $region10: #{tpu_custom_call.1} parent=5 // pred_check_branch
        %170 = sbr.rel (%p167) target = $region12
      $region11: #{tpu_custom_call.1} parent=5 // pred_region
        %s171 = ssub.s32 %s19, 1
        // Predicated region
        $region13: #{tpu_custom_call.1} parent=11 // pred_check
          %p172 = pneg %p108
        $region14: #{tpu_custom_call.1} parent=11 // pred_check_branch
          %174 = sbr.rel (%p172) target = $region16
        $region15: #{tpu_custom_call.1} parent=11 // pred_region
          %s176 = ssub.s32 3072, 3072
          %177 = vsyncadd [#allocation7], %s176
          %s178 = sshll.u32 [#allocation8], 4
          %s179 = int_to_ptr.vmem [resolvable:$true] %s178
          %184 = dma.hbm_to_vmem [thread:$0]  %s2, 3072, %s179, [#allocation7], 64, 64, 4
        $region16: #{tpu_custom_call.1} parent=11 // pred_fallthru
          _
        // Predicated region
        $region17: #{tpu_custom_call.1} parent=11 // pred_check
          %p185 = pneg %p129
        $region18: #{tpu_custom_call.1} parent=11 // pred_check_branch
          %187 = sbr.rel (%p185) target = $region20
        $region19: #{tpu_custom_call.1} parent=11 // pred_region
          _
        $region20: #{tpu_custom_call.1} parent=11 // pred_fallthru
          _
      $region12: #{tpu_custom_call.1} parent=5 // pred_fallthru
        _
      %p188 = scmp.lt.s32.totalorder %s19, 2
      // Predicated region
      $region21: #{tpu_custom_call.1} parent=5 // pred_check
        %p189 = pneg %p188
      $region22: #{tpu_custom_call.1} parent=5 // pred_check_branch
        %191 = sbr.rel (%p189) target = $region24
      $region23: #{tpu_custom_call.1} parent=5 // pred_region
        // Predicated region
        $region25: #{tpu_custom_call.1} parent=23 // pred_check
          %p192 = pneg %p53
        $region26: #{tpu_custom_call.1} parent=23 // pred_check_branch
          %194 = sbr.rel (%p192) target = $region28
        $region27: #{tpu_custom_call.1} parent=23 // pred_region
          %s195 = sand.u32 %s43, 1
          %s196 = scalar_lea.sflag [#allocation4], %s195
          %s197 = sand.u32 %s43, 1
          %s198 = smul.addr %s197, 8
          %s199 = scalar_lea.vmem [#allocation3], %s198
          %s200 = smul.u32 2, %s27
          %s202 = ssub.s32 128, 128
          %203 = vsyncadd %s196, %s202
          %s204 = smul.addr %s26, 2
          %s205 = sadd.s32 %s200, %s204
          %s206 = smul.addr %s205, 64
          %s207 = scalar_lea.hbm %s0, %s206
          %s208 = sshll.u32 %s199, 4
          %s209 = int_to_ptr.vmem [resolvable:$true] %s208
          %214 = dma.hbm_to_vmem [thread:$0]  %s207, 128, %s209, %s196, 64, 64, 4
        $region28: #{tpu_custom_call.1} parent=23 // pred_fallthru
          _
        // Predicated region
        $region29: #{tpu_custom_call.1} parent=23 // pred_check
          %p215 = pneg %p81
        $region30: #{tpu_custom_call.1} parent=23 // pred_check_branch
          %217 = sbr.rel (%p215) target = $region32
        $region31: #{tpu_custom_call.1} parent=23 // pred_region
          %s218 = sand.u32 %s19, 1
          %s219 = scalar_lea.sflag [#allocation7], %s218
          %s220 = sand.u32 %s71, 1
          %s221 = smul.addr %s220, 8
          %s222 = scalar_lea.vmem [#allocation6], %s221
          %s223 = smul.u32 2, %s27
          %s225 = ssub.s32 128, 128
          %226 = vsyncadd %s219, %s225
          %s227 = smul.addr %s26, 2
          %s228 = sadd.s32 %s223, %s227
          %s229 = smul.addr %s228, 64
          %s230 = scalar_lea.hbm %s1, %s229
          %s231 = sshll.u32 %s222, 4
          %s232 = int_to_ptr.vmem [resolvable:$true] %s231
          %237 = dma.hbm_to_vmem [thread:$0]  %s230, 128, %s232, %s219, 64, 64, 4
        $region32: #{tpu_custom_call.1} parent=23 // pred_fallthru
          _
      $region24: #{tpu_custom_call.1} parent=5 // pred_fallthru
        _
      %p238 = scmp.le.s32.totalorder 1, %s19
      %p239 = scmp.lt.s32.totalorder %s19, 3
      %p240 = pnand %p238, %p239
      %p241 = pneg %p240
      // Predicated region
      $region33: #{tpu_custom_call.1} parent=5 // pred_check
        _
      $region34: #{tpu_custom_call.1} parent=5 // pred_check_branch
        %243 = sbr.rel (%p240) target = $region36
      $region35: #{tpu_custom_call.1} parent=5 // pred_region
        %s244 = ssub.s32 %s19, 1
        %s245 = sand.u32 %s46, 1
        %s246 = scalar_lea.sflag [#allocation4], %s245
        %s247 = sand.u32 %s46, 1
        %s248 = smul.addr %s247, 8
        %s249 = scalar_lea.vmem [#allocation3], %s248
        // Predicated region
        $region37: #{tpu_custom_call.1} parent=35 // pred_check
          %p250 = pneg %p59
        $region38: #{tpu_custom_call.1} parent=35 // pred_check_branch
          %252 = sbr.rel (%p250) target = $region40
        $region39: #{tpu_custom_call.1} parent=35 // pred_region
          %253 = dma.done %s246, 128
        $region40: #{tpu_custom_call.1} parent=35 // pred_fallthru
          _
        %s254 = sand.u32 %s24, 1
        %s255 = scalar_lea.sflag [#allocation7], %s254
        %s256 = sand.u32 %s74, 1
        %s257 = smul.addr %s256, 8
        %s258 = scalar_lea.vmem [#allocation6], %s257
        // Predicated region
        $region41: #{tpu_custom_call.1} parent=35 // pred_check
          %p259 = pneg %p87
        $region42: #{tpu_custom_call.1} parent=35 // pred_check_branch
          %261 = sbr.rel (%p259) target = $region44
        $region43: #{tpu_custom_call.1} parent=35 // pred_region
          %262 = dma.done %s255, 128
        $region44: #{tpu_custom_call.1} parent=35 // pred_fallthru
          _
        // Predicated region
        $region45: #{tpu_custom_call.1} parent=35 // pred_check
          %p263 = pneg %p108
        $region46: #{tpu_custom_call.1} parent=35 // pred_check_branch
          %265 = sbr.rel (%p263) target = $region48
        $region47: #{tpu_custom_call.1} parent=35 // pred_region
          %266 = dma.done [#allocation7], 3072
        $region48: #{tpu_custom_call.1} parent=35 // pred_fallthru
          _
        %s267 = sand.u32 %s46, 1
        %s268 = scalar_lea.sflag [#allocation4], %s267
        %s269 = sand.u32 %s46, 1
        %s270 = smul.addr %s269, 8
        %s271 = scalar_lea.vmem [#allocation3], %s270
        %p272 = pneg %p59
        %p273 = pneg %p56
        %s274 = sand.u32 %s24, 1
        %s275 = scalar_lea.sflag [#allocation7], %s274
        %s276 = sand.u32 %s74, 1
        %s277 = smul.addr %s276, 8
        %s278 = scalar_lea.vmem [#allocation6], %s277
        %p279 = pneg %p87
        %p280 = pneg %p84
        %p281 = pneg %p108
        %p282 = pneg %p105
        %p283 = pneg %p129
        %p284 = pneg %p126
        %p285 = pneg %p157
        %p286 = pneg %p154
        %s287 = sand.u32 %s144, 1
        %s288 = scalar_lea.sflag [#allocation5], %s287
        %s289 = sand.u32 %s144, 1
        %s290 = smul.addr %s289, 8
        %s291 = scalar_lea.vmem [#allocation9], %s290
        %s292 = smul.u32 2, %s29
        %s293 = smul.u32 2, %s29
        %s294 = smul.u32 2, %s29
        %v296 = vld [vmem:[%s258] sm:$0xf]
        %v297 = vld [vmem:[%s258 + $0x4] sm:$0xf]
        %v300 = vunpack.c.l.b16 %v296
        %v301 = vunpack.c.l.b16 %v297
        %v302 = vpack.c.b16 %v301, %v300
        %304 = vst [vmem:[#allocation2] sm:$0xff] %v302
        %v305 = vld [vmem:[%s249] sm:$0xf]
        %v306 = vld [vmem:[%s249 + $0x4] sm:$0xf]
        %v309 = vunpack.c.l.b16 %v305
        %v310 = vunpack.c.l.b16 %v306
        %v311 = vpack.c.b16 %v310, %v309
        %313 = vst [vmem:[#allocation2 + $0x8] sm:$0xff] %v311
        %v314 = vld [vmem:[%s249] sm:$0xf]
        %v315 = vld [vmem:[%s249 + $0x4] sm:$0xf]
        %s316 = scalar_lea.vmem [#allocation8], 128
        %v317 = vld [vmem:[%s316] sm:$0xf]
        %v318 = vld [vmem:[%s316 + $0x4] sm:$0xf]
        %v319 = vld [vmem:[%s316 + $0x8] sm:$0xf]
        %v320 = vld [vmem:[%s316 + $0xc] sm:$0xf]
        %v321 = vld [vmem:[%s316 + $0x10] sm:$0xf]
        %v322 = vld [vmem:[%s316 + $0x14] sm:$0xf]
        %v323 = vld [vmem:[%s316 + $0x18] sm:$0xf]
        %v324 = vld [vmem:[%s316 + $0x1c] sm:$0xf]
        %v325 = vld [vmem:[%s316 + $0x20] sm:$0xf]
        %v326 = vld [vmem:[%s316 + $0x24] sm:$0xf]
        %v327 = vld [vmem:[%s316 + $0x28] sm:$0xf]
        %v328 = vld [vmem:[%s316 + $0x2c] sm:$0xf]
        %v329 = vld [vmem:[%s316 + $0x30] sm:$0xf]
        %v330 = vld [vmem:[%s316 + $0x34] sm:$0xf]
        %v331 = vld [vmem:[%s316 + $0x38] sm:$0xf]
        %v332 = vld [vmem:[%s316 + $0x3c] sm:$0xf]
        %v333 = vld [vmem:[#allocation2] sm:$0xc0]
        %v334 = vld [vmem:[#allocation2 + $0x8] sm:$0x3f]
        %v335 = vld [vmem:[#allocation8] sm:$0xf]
        %v336 = vld [vmem:[#allocation8 + $0x4] sm:$0xf]
        %v337 = vld [vmem:[#allocation8 + $0x8] sm:$0xf]
        %v338 = vld [vmem:[#allocation8 + $0xc] sm:$0xf]
        %v339 = vld [vmem:[#allocation8 + $0x10] sm:$0xf]
        %v340 = vld [vmem:[#allocation8 + $0x14] sm:$0xf]
        %v341 = vld [vmem:[#allocation8 + $0x18] sm:$0xf]
        %v342 = vld [vmem:[#allocation8 + $0x1c] sm:$0xf]
        %v343 = vld [vmem:[#allocation8 + $0x20] sm:$0xf]
        %v344 = vld [vmem:[#allocation8 + $0x24] sm:$0xf]
        %v345 = vld [vmem:[#allocation8 + $0x28] sm:$0xf]
        %v346 = vld [vmem:[#allocation8 + $0x2c] sm:$0xf]
        %v347 = vld [vmem:[#allocation8 + $0x30] sm:$0xf]
        %v348 = vld [vmem:[#allocation8 + $0x34] sm:$0xf]
        %v349 = vld [vmem:[#allocation8 + $0x38] sm:$0xf]
        %v350 = vld [vmem:[#allocation8 + $0x3c] sm:$0xf]
        %vm353 = vcmask 1041408
        %v354 = vrot.slane %v333, 6
        %v355 = vrot.slane %v334, 6
        %v356 = vsel %vm353, %v354, %v355
        %v374 = vunpack.c.l.b16 %v335
        %v375 = vunpack.c.l.b16 %v336
        %v376 = vunpack.c.l.b16 %v337
        %v377 = vunpack.c.l.b16 %v338
        %v378 = vunpack.c.l.b16 %v339
        %v379 = vunpack.c.l.b16 %v340
        %v380 = vunpack.c.l.b16 %v341
        %v381 = vunpack.c.l.b16 %v342
        %v382 = vunpack.c.l.b16 %v343
        %v383 = vunpack.c.l.b16 %v344
        %v384 = vunpack.c.l.b16 %v345
        %v385 = vunpack.c.l.b16 %v346
        %v386 = vunpack.c.l.b16 %v347
        %v387 = vunpack.c.l.b16 %v348
        %v388 = vunpack.c.l.b16 %v349
        %v389 = vunpack.c.l.b16 %v350
        %v390 = vpack.c.b16 %v375, %v374
        %v391 = vpack.c.b16 %v377, %v376
        %v392 = vpack.c.b16 %v379, %v378
        %v393 = vpack.c.b16 %v381, %v380
        %v394 = vpack.c.b16 %v383, %v382
        %v395 = vpack.c.b16 %v385, %v384
        %v396 = vpack.c.b16 %v387, %v386
        %v397 = vpack.c.b16 %v389, %v388
        %406 = vmatprep.subr.bf16.mxu0 0
        %407 = vmatpush1.bf16.msra.mxu0 %v390
        %408 = vmatprep.subr.bf16.mxu0 0
        %409 = vmatpush1.bf16.msra.mxu0 %v391
        %410 = vmatprep.subr.bf16.mxu0 0
        %411 = vmatpush1.bf16.msra.mxu0 %v392
        %412 = vmatprep.subr.bf16.mxu0 0
        %413 = vmatpush1.bf16.msra.mxu0 %v393
        %414 = vmatprep.subr.bf16.mxu0 0
        %415 = vmatpush1.bf16.msra.mxu0 %v394
        %416 = vmatprep.subr.bf16.mxu0 0
        %417 = vmatpush1.bf16.msra.mxu0 %v395
        %418 = vmatprep.subr.bf16.mxu0 0
        %419 = vmatpush1.bf16.msra.mxu0 %v396
        %420 = vmatprep.subr.bf16.mxu0 0
        %421 = vmatpush1.bf16.msra.mxu0 %v397
        %422 = vmatprep.subr.bf16.mxu0 0
        %423 = vmatpush1.bf16.msra.mxu0 0
        %424 = vmatprep.subr.bf16.mxu0 0
        %425 = vmatpush1.bf16.msra.mxu0 0
        %426 = vmatprep.subr.bf16.mxu0 0
        %427 = vmatpush1.bf16.msra.mxu0 0
        %428 = vmatprep.subr.bf16.mxu0 0
        %429 = vmatpush1.bf16.msra.mxu0 0
        %430 = vmatprep.subr.bf16.mxu0 0
        %431 = vmatpush1.bf16.msra.mxu0 0
        %432 = vmatprep.subr.bf16.mxu0 0
        %433 = vmatpush1.bf16.msra.mxu0 0
        %434 = vmatprep.subr.bf16.mxu0 0
        %435 = vmatpush1.bf16.msra.mxu0 0
        %436 = vmatprep.subr.bf16.mxu0 0
        %437 = vmatpush1.bf16.msra.mxu0 0
        %438 = vmatprep.mubr.bf16.mxu0 0
        %439 = vmatmul.mubr.bf16.gmra.mrb[0].mxu0 %v356
        %v440 = vpop.f32.mrb[0].mxu0
        %v441 = vadd.f32 0.0, %v440
        %v442 = vpop.f32.mrb[0].mxu0
        %v443 = vpop.f32.mrb[0].mxu0
        %v444 = vadd.f32 0.0, %v443
        %v445 = vpop.f32.mrb[0].mxu0
        %446 = vdwg.mxu0
        %v449 = vunpack.c.l.b16 %v314
        %v450 = vunpack.c.l.b16 %v315
        %v451 = vpack.c.b16 %v450, %v449
        %v469 = vunpack.c.l.b16 %v317
        %v470 = vunpack.c.l.b16 %v318
        %v471 = vunpack.c.l.b16 %v319
        %v472 = vunpack.c.l.b16 %v320
        %v473 = vunpack.c.l.b16 %v321
        %v474 = vunpack.c.l.b16 %v322
        %v475 = vunpack.c.l.b16 %v323
        %v476 = vunpack.c.l.b16 %v324
        %v477 = vunpack.c.l.b16 %v325
        %v478 = vunpack.c.l.b16 %v326
        %v479 = vunpack.c.l.b16 %v327
        %v480 = vunpack.c.l.b16 %v328
        %v481 = vunpack.c.l.b16 %v329
        %v482 = vunpack.c.l.b16 %v330
        %v483 = vunpack.c.l.b16 %v331
        %v484 = vunpack.c.l.b16 %v332
        %v485 = vpack.c.b16 %v470, %v469
        %v486 = vpack.c.b16 %v472, %v471
        %v487 = vpack.c.b16 %v474, %v473
        %v488 = vpack.c.b16 %v476, %v475
        %v489 = vpack.c.b16 %v478, %v477
        %v490 = vpack.c.b16 %v480, %v479
        %v491 = vpack.c.b16 %v482, %v481
        %v492 = vpack.c.b16 %v484, %v483
        %501 = vmatprep.subr.bf16.mxu0 0
        %502 = vmatpush1.bf16.msra.mxu0 %v485
        %503 = vmatprep.subr.bf16.mxu0 0
        %504 = vmatpush1.bf16.msra.mxu0 %v486
        %505 = vmatprep.subr.bf16.mxu0 0
        %506 = vmatpush1.bf16.msra.mxu0 %v487
        %507 = vmatprep.subr.bf16.mxu0 0
        %508 = vmatpush1.bf16.msra.mxu0 %v488
        %509 = vmatprep.subr.bf16.mxu0 0
        %510 = vmatpush1.bf16.msra.mxu0 %v489
        %511 = vmatprep.subr.bf16.mxu0 0
        %512 = vmatpush1.bf16.msra.mxu0 %v490
        %513 = vmatprep.subr.bf16.mxu0 0
        %514 = vmatpush1.bf16.msra.mxu0 %v491
        %515 = vmatprep.subr.bf16.mxu0 0
        %516 = vmatpush1.bf16.msra.mxu0 %v492
        %517 = vmatprep.subr.bf16.mxu0 0
        %518 = vmatpush1.bf16.msra.mxu0 0
        %519 = vmatprep.subr.bf16.mxu0 0
        %520 = vmatpush1.bf16.msra.mxu0 0
        %521 = vmatprep.subr.bf16.mxu0 0
        %522 = vmatpush1.bf16.msra.mxu0 0
        %523 = vmatprep.subr.bf16.mxu0 0
        %524 = vmatpush1.bf16.msra.mxu0 0
        %525 = vmatprep.subr.bf16.mxu0 0
        %526 = vmatpush1.bf16.msra.mxu0 0
        %527 = vmatprep.subr.bf16.mxu0 0
        %528 = vmatpush1.bf16.msra.mxu0 0
        %529 = vmatprep.subr.bf16.mxu0 0
        %530 = vmatpush1.bf16.msra.mxu0 0
        %531 = vmatprep.subr.bf16.mxu0 0
        %532 = vmatpush1.bf16.msra.mxu0 0
        %533 = vmatprep.mubr.bf16.mxu0 0
        %534 = vmatmul.mubr.bf16.gmra.mrb[0].mxu0 %v451
        %v535 = vpop.f32.mrb[0].mxu0
        %v536 = vadd.f32 %v441, %v535
        %v537 = vpop.f32.mrb[0].mxu0
        %v538 = vpop.f32.mrb[0].mxu0
        %v539 = vadd.f32 %v444, %v538
        %v540 = vpop.f32.mrb[0].mxu0
        %541 = vdwg.mxu0
        %v542 = vld [vmem:[#allocation2] sm:$0x80]
        %v543 = vld [vmem:[#allocation2 + $0x8] sm:$0x7f]
        %s544 = scalar_lea.vmem [#allocation8], 64
        %v545 = vld [vmem:[%s544] sm:$0xf]
        %v546 = vld [vmem:[%s544 + $0x4] sm:$0xf]
        %v547 = vld [vmem:[%s544 + $0x8] sm:$0xf]
        %v548 = vld [vmem:[%s544 + $0xc] sm:$0xf]
        %v549 = vld [vmem:[%s544 + $0x10] sm:$0xf]
        %v550 = vld [vmem:[%s544 + $0x14] sm:$0xf]
        %v551 = vld [vmem:[%s544 + $0x18] sm:$0xf]
        %v552 = vld [vmem:[%s544 + $0x1c] sm:$0xf]
        %v553 = vld [vmem:[%s544 + $0x20] sm:$0xf]
        %v554 = vld [vmem:[%s544 + $0x24] sm:$0xf]
        %v555 = vld [vmem:[%s544 + $0x28] sm:$0xf]
        %v556 = vld [vmem:[%s544 + $0x2c] sm:$0xf]
        %v557 = vld [vmem:[%s544 + $0x30] sm:$0xf]
        %v558 = vld [vmem:[%s544 + $0x34] sm:$0xf]
        %v559 = vld [vmem:[%s544 + $0x38] sm:$0xf]
        %v560 = vld [vmem:[%s544 + $0x3c] sm:$0xf]
        %vm563 = vcmask 1040384
        %v564 = vrot.slane %v542, 7
        %v565 = vrot.slane %v543, 7
        %v566 = vsel %vm563, %v564, %v565
        %v584 = vunpack.c.l.b16 %v545
        %v585 = vunpack.c.l.b16 %v546
        %v586 = vunpack.c.l.b16 %v547
        %v587 = vunpack.c.l.b16 %v548
        %v588 = vunpack.c.l.b16 %v549
        %v589 = vunpack.c.l.b16 %v550
        %v590 = vunpack.c.l.b16 %v551
        %v591 = vunpack.c.l.b16 %v552
        %v592 = vunpack.c.l.b16 %v553
        %v593 = vunpack.c.l.b16 %v554
        %v594 = vunpack.c.l.b16 %v555
        %v595 = vunpack.c.l.b16 %v556
        %v596 = vunpack.c.l.b16 %v557
        %v597 = vunpack.c.l.b16 %v558
        %v598 = vunpack.c.l.b16 %v559
        %v599 = vunpack.c.l.b16 %v560
        %v600 = vpack.c.b16 %v585, %v584
        %v601 = vpack.c.b16 %v587, %v586
        %v602 = vpack.c.b16 %v589, %v588
        %v603 = vpack.c.b16 %v591, %v590
        %v604 = vpack.c.b16 %v593, %v592
        %v605 = vpack.c.b16 %v595, %v594
        %v606 = vpack.c.b16 %v597, %v596
        %v607 = vpack.c.b16 %v599, %v598
        %616 = vmatprep.subr.bf16.mxu0 0
        %617 = vmatpush1.bf16.msra.mxu0 %v600
        %618 = vmatprep.subr.bf16.mxu0 0
        %619 = vmatpush1.bf16.msra.mxu0 %v601
        %620 = vmatprep.subr.bf16.mxu0 0
        %621 = vmatpush1.bf16.msra.mxu0 %v602
        %622 = vmatprep.subr.bf16.mxu0 0
        %623 = vmatpush1.bf16.msra.mxu0 %v603
        %624 = vmatprep.subr.bf16.mxu0 0
        %625 = vmatpush1.bf16.msra.mxu0 %v604
        %626 = vmatprep.subr.bf16.mxu0 0
        %627 = vmatpush1.bf16.msra.mxu0 %v605
        %628 = vmatprep.subr.bf16.mxu0 0
        %629 = vmatpush1.bf16.msra.mxu0 %v606
        %630 = vmatprep.subr.bf16.mxu0 0
        %631 = vmatpush1.bf16.msra.mxu0 %v607
        %632 = vmatprep.subr.bf16.mxu0 0
        %633 = vmatpush1.bf16.msra.mxu0 0
        %634 = vmatprep.subr.bf16.mxu0 0
        %635 = vmatpush1.bf16.msra.mxu0 0
        %636 = vmatprep.subr.bf16.mxu0 0
        %637 = vmatpush1.bf16.msra.mxu0 0
        %638 = vmatprep.subr.bf16.mxu0 0
        %639 = vmatpush1.bf16.msra.mxu0 0
        %640 = vmatprep.subr.bf16.mxu0 0
        %641 = vmatpush1.bf16.msra.mxu0 0
        %642 = vmatprep.subr.bf16.mxu0 0
        %643 = vmatpush1.bf16.msra.mxu0 0
        %644 = vmatprep.subr.bf16.mxu0 0
        %645 = vmatpush1.bf16.msra.mxu0 0
        %646 = vmatprep.subr.bf16.mxu0 0
        %647 = vmatpush1.bf16.msra.mxu0 0
        %648 = vmatprep.mubr.bf16.mxu0 0
        %649 = vmatmul.mubr.bf16.gmra.mrb[0].mxu0 %v566
        %v650 = vpop.f32.mrb[0].mxu0
        %v651 = vadd.f32 0.0, %v650
        %v652 = vpop.f32.mrb[0].mxu0
        %v653 = vpop.f32.mrb[0].mxu0
        %v654 = vadd.f32 0.0, %v653
        %v655 = vpop.f32.mrb[0].mxu0
        %656 = vdwg.mxu0
        %v657 = vadd.f32 %v536, %v651
        %v658 = vadd.f32 %v539, %v654
        %v659 = vld [vmem:[%s3] sm:$0x1]
        %v661 = vlaneseq
        %v662 = vshrl.u32 %v661, 7
        %v663 = vsub.s32 0, %v662
        %v664 = vrot.slane %v659, %v663
        %v666 = vadd.f32 %v657, %v664
        %v667 = vadd.f32 %v658, %v664
        %v668 = vmax.f32 %v666, 0.0
        %v669 = vmax.f32 %v667, 0.0
        %v670 = vpack.c.bf16 %v669, %v668
        %v672 = vunpack.c.l.b16 %v670
        %v673 = vunpack.c.h.b16 %v670
        %v674 = vpack.c.b16 %v672, %v672
        %v675 = vpack.c.b16 %v673, %v673
        %678 = vst [vmem:[%s291] sm:$0xf] %v674
        %679 = vst [vmem:[%s291 + $0x4] sm:$0xf] %v675
        %s680 = sand.u32 %s144, 1
        %s681 = scalar_lea.sflag [#allocation5], %s680
        %s682 = sand.u32 %s144, 1
        %s683 = smul.addr %s682, 8
        %s684 = scalar_lea.vmem [#allocation9], %s683
        // Predicated region
        $region49: #{tpu_custom_call.1} parent=35 // pred_check
          %p685 = pneg %p154
        $region50: #{tpu_custom_call.1} parent=35 // pred_check_branch
          %687 = sbr.rel (%p685) target = $region52
        $region51: #{tpu_custom_call.1} parent=35 // pred_region
          %s688 = smul.u32 2, %s29
          %s690 = ssub.s32 128, 128
          %691 = vsyncadd %s681, %s690
          %s692 = smul.addr %s28, 2
          %s693 = sadd.s32 %s688, %s692
          %s694 = smul.addr %s693, 64
          %s695 = scalar_lea.hbm %s4, %s694
          %s696 = sshll.u32 %s684, 4
          %s697 = int_to_ptr.vmem [resolvable:$true] %s696
          %702 = dma.vmem_to_hbm [thread:$0]  %s697, 128, %s695, %s681, 64, 64, 4
        $region52: #{tpu_custom_call.1} parent=35 // pred_fallthru
          _
      $region36: #{tpu_custom_call.1} parent=5 // pred_fallthru
        _
      %p703 = scmp.le.s32.totalorder 2, %s19
      // Predicated region
      $region53: #{tpu_custom_call.1} parent=5 // pred_check
        %p704 = pneg %p703
      $region54: #{tpu_custom_call.1} parent=5 // pred_check_branch
        %706 = sbr.rel (%p704) target = $region56
      $region55: #{tpu_custom_call.1} parent=5 // pred_region
        %s707 = ssub.s32 %s19, 2
        // Predicated region
        $region57: #{tpu_custom_call.1} parent=55 // pred_check
          %p708 = pneg %p160
        $region58: #{tpu_custom_call.1} parent=55 // pred_check_branch
          %710 = sbr.rel (%p708) target = $region60
        $region59: #{tpu_custom_call.1} parent=55 // pred_region
          %s711 = sand.u32 %s145, 1
          %s712 = scalar_lea.sflag [#allocation5], %s711
          %s713 = sand.u32 %s145, 1
          %s714 = smul.addr %s713, 8
          %s715 = scalar_lea.vmem [#allocation9], %s714
          %716 = dma.done %s712, 128
        $region60: #{tpu_custom_call.1} parent=55 // pred_fallthru
          _
      $region56: #{tpu_custom_call.1} parent=5 // pred_fallthru
        _
    $region6: #{tpu_custom_call.1} parent=1 // loop_footer
      %s23 = sadd.s32 1, %s19
    $region7: #{tpu_custom_call.1} parent=1 // loop_footer_branch
      %18 = sbr.rel target = $region3
    $region8: #{tpu_custom_call.1} parent=1 // loop_exit
      _
    %717 = vsyncpa [#allocation4], 1
    %s718 = scalar_lea.sflag [#allocation4], 1
    %719 = vsyncpa %s718, 1
    %720 = vsyncpa [#allocation7], 1
    %s721 = scalar_lea.sflag [#allocation7], 1
    %722 = vsyncpa %s721, 1
    %723 = vsyncpa [#allocation5], 1
    %s724 = scalar_lea.sflag [#allocation5], 1
    %725 = vsyncpa %s724, 1

</llo_original>
